<compile_context>
chip_gen: v7x
topology: tpu7x:2x2x1
jax: 0.10.0
libtpu: 0.0.40
codegen_flags: <defaults>
</compile_context>

<pallas_src>
import functools

import jax
import jax.numpy as jnp
import numpy as np
from jax.experimental import pallas as pl
from jax.experimental.pallas import tpu as pltpu


def _round_up(x, m):
    return ((x + m - 1) // m) * m


def _flat_roll1(x):
    """torch.roll(x, shifts=1, dims=None): flatten row-major, rotate right by 1."""
    return jnp.roll(x.reshape(-1), 1).reshape(x.shape)


def _choose_tiling(B):
    """Return (tile_b, padded_B).

    * tiny B: one full block (block dim == array dim, so no (8,128) issue).
    * B >= 64: at least 2 grid steps (2-TensorCore sharding on v7x), tiles
      capped at 1024 rows (amortizes ~0.35us/step overhead on v5e/v6e while
      keeping per-tile VMEM well under v7x limits), and the batch padded up
      to a multiple of the tile instead of collapsing to tiny tiles.
    """
    if B <= 16:
        return B, B
    if B < 64:
        tb = _round_up(B, 8)
        return tb, tb
    g = max(2, -(-B // 1024))            # number of grid steps
    tb = _round_up(-(-B // g), 8)        # rows per step, multiple of 8
    return tb, g * tb


def _build_const_mats(N, V):
    """Tiny constant 0/1 matrices built at trace time (~72 KiB total for N=8,V=32).

    R [N, NV]  :  w @ R   lane-repeats a per-slot coefficient V times per slot.
    T [V, NV]  :  v @ T   tiles a V-vector across the N slots.
    P [NV, V]  :  x @ P   sums the N slots (get_val reduction); P == T.T.
    """
    NV = N * V
    R = np.zeros((N, NV), np.float32)
    for n in range(N):
        R[n, n * V:(n + 1) * V] = 1.0
    T = np.tile(np.eye(V, dtype=np.float32), (1, N))     # [V, NV]
    P = np.tile(np.eye(V, dtype=np.float32), (N, 1))     # [NV, V]
    return jnp.asarray(R), jnp.asarray(T), jnp.asarray(P)


def queue_kernel(q_ref, c_ref, r_ref, t_ref, p_ref, nq_ref, small_ref,
                 *, N, V, off_val, off_log):
    q = q_ref[...]                       # [tb, N*V]  flattened queue (lane-dense)
    c = c_ref[...]                       # [tb, CW]   packed per-batch inputs
    R = r_ref[...]                       # [N, NV]    lane-repeat
    T = t_ref[...]                       # [V, NV]    slot-tile
    P = p_ref[...]                       # [NV, V]    slot-reduce

    # Expand per-slot coefficients across V lanes and tile value/zero_vec
    # across the N slots: five tiny exact 0/1 matmuls on the idle MXU.
    rep_q = jnp.dot(c[:, 0 * N:1 * N], R, preferred_element_type=jnp.float32)
    rep_v = jnp.dot(c[:, 1 * N:2 * N], R, preferred_element_type=jnp.float32)
    rep_z = jnp.dot(c[:, 2 * N:3 * N], R, preferred_element_type=jnp.float32)
    val_t = jnp.dot(c[:, off_val:off_val + V], T,
                    preferred_element_type=jnp.float32)
    zer_t = jnp.dot(c[:, off_val + V:off_val + 2 * V], T,
                    preferred_element_type=jnp.float32)

    # Fused null/put/get superposition: 3 lane-dense broadcast FMAs.
    nq_ref[...] = q * rep_q + val_t * rep_v + zer_t * rep_z

    # get_val = should_get * read(): mask, then reduce over slots on the MXU.
    gv = jnp.dot(q * rep_z, P, preferred_element_type=jnp.float32)   # [tb, V]

    # Sharpened softmax + 1e-8-clamped renorm on the tiny [tb, N] pointers
    # (sharpen factor already folded into the packed logits).
    def _sharp(z):
        z = z - jnp.max(z, axis=1, keepdims=True)
        e = jnp.exp(z)
        sm = e * pl.reciprocal(jnp.sum(e, axis=1, keepdims=True), approx=False)
        s = jnp.sum(sm, axis=1, keepdims=True)
        return sm * pl.reciprocal(jnp.maximum(s, 1e-8), approx=False)

    nh = _sharp(c[:, off_log:off_log + N])
    nt = _sharp(c[:, off_log + N:off_log + 2 * N])

    # Pack the three narrow results into one lane-dense output slab: the
    # output DMA is a single full-width (128-lane) block per grid step.
    small_ref[...] = jnp.zeros_like(small_ref)
    small_ref[:, 0:V] = gv
    small_ref[:, V:V + N] = nh
    small_ref[:, V + N:V + 2 * N] = nt


@jax.jit
def queue_forward(sharpen_head, sharpen_tail,
                  should_put, should_get, should_null_op, value,
                  queue, head, tail, zero_vec):
    """Returns (get_val, new_queue, new_head, new_tail)."""
    B, N, V = queue.shape
    NV = N * V
    f32 = jnp.float32

    off_val = 3 * N                       # start of value inside packed coeffs
    off_log = 3 * N + 2 * V               # start of head/tail logits
    CW = _round_up(off_log + 2 * N, 128)  # packed-coefficient width (lane-dense)
    SW = _round_up(V + 2 * N, 128)        # packed small-output width (lane-dense)

    queue_f = queue.astype(f32).reshape(B, NV)
    head = head.astype(f32)
    tail = tail.astype(f32)
    value = value.astype(f32)
    zero_vec = zero_vec.astype(f32)
    sp = should_put.astype(f32)[:, None]
    sg = should_get.astype(f32)[:, None]
    sn = should_null_op.astype(f32)[:, None]
    sh = jnp.asarray(sharpen_head, f32)
    st = jnp.asarray(sharpen_tail, f32)

    # Tiny [B, N] work in the wrapper: flattened (batch-wrapping) torch.roll,
    # fused superposition coefficients, pre-sharpened head/tail logits.
    new_tail = _flat_roll1(tail)          # put_()'s rolled tail
    get_head = _flat_roll1(head)          # get_()'s rolled head

    w_q = sn + sp * (1.0 - new_tail) + sg * (1.0 - head)
    w_v = sp * new_tail
    w_z = sg * head                       # doubles as the get_val mask
    nh_s = (head * (sn + sp) + get_head * sg) * sh
    nt_s = (tail * (sn + sg) + new_tail * sp) * st

    coeffs = jnp.concatenate([w_q, w_v, w_z, value, zero_vec, nh_s, nt_s], axis=1)
    coeffs = jnp.pad(coeffs, ((0, 0), (0, CW - coeffs.shape[1])))

    tb, Bp = _choose_tiling(B)
    if Bp != B:                           # pad batch instead of shrinking tiles
        queue_f = jnp.pad(queue_f, ((0, Bp - B), (0, 0)))
        coeffs = jnp.pad(coeffs, ((0, Bp - B), (0, 0)))
    grid = (Bp // tb,)

    R, T, P = _build_const_mats(N, V)
    kernel = functools.partial(queue_kernel, N=N, V=V,
                               off_val=off_val, off_log=off_log)

    out_shape = (
        jax.ShapeDtypeStruct((Bp, NV), f32),   # new queue (flat, lane-dense)
        jax.ShapeDtypeStruct((Bp, SW), f32),   # [get_val | new_head | new_tail | pad]
    )

    nq_flat, small = pl.pallas_call(
        kernel,
        out_shape=out_shape,
        grid=grid,
        in_specs=[
            pl.BlockSpec((tb, NV), lambda i: (i, 0)),   # queue slab
            pl.BlockSpec((tb, CW), lambda i: (i, 0)),   # packed coefficients
            pl.BlockSpec((N, NV), lambda i: (0, 0)),    # R (constant, fetched once)
            pl.BlockSpec((V, NV), lambda i: (0, 0)),    # T (constant)
            pl.BlockSpec((NV, V), lambda i: (0, 0)),    # P (constant)
        ],
        out_specs=(
            pl.BlockSpec((tb, NV), lambda i: (i, 0)),
            pl.BlockSpec((tb, SW), lambda i: (i, 0)),
        ),
        compiler_params=pltpu.CompilerParams(
            dimension_semantics=("parallel",),          # 2-TC sharding on v7x
            vmem_limit_bytes=32 * 1024 * 1024),
    )(queue_f, coeffs, R, T, P)

    gv = small[:B, 0:V]
    nh = small[:B, V:V + N]
    nt = small[:B, V + N:V + 2 * N]
    return gv, nq_flat[:B].reshape(B, N, V), nh, nt


def queue_forward_ref(sharpen_head, sharpen_tail, should_put, should_get,
                      should_null_op, value, queue, head, tail, zero_vec):
    """Pure-JAX reference mirroring the PyTorch module exactly."""
    def flat_roll(x):
        return jnp.roll(x.reshape(-1), 1).reshape(x.shape)

    new_tail = flat_roll(tail)
    put_queue = (queue * (1 - new_tail)[:, :, None]
                 + value[:, None, :] * new_tail[:, :, None])
    put_tail = new_tail

    get_val = jnp.einsum('bnv,bn->bv', queue, head)
    get_queue = (queue * (1 - head)[:, :, None]
                 + zero_vec[:, None, :] * head[:, :, None])
    get_head = flat_roll(head)

    nq = (jnp.einsum('bnv,b->bnv', queue, should_null_op)
          + jnp.einsum('bnv,b->bnv', put_queue, should_put)
          + jnp.einsum('bnv,b->bnv', get_queue, should_get))
    nh = (jnp.einsum('bn,b->bn', head, should_null_op)
          + jnp.einsum('bn,b->bn', head, should_put)
          + jnp.einsum('bn,b->bn', get_head, should_get))
    nt = (jnp.einsum('bn,b->bn', tail, should_null_op)
          + jnp.einsum('bn,b->bn', put_tail, should_put)
          + jnp.einsum('bn,b->bn', tail, should_get))

    nh = jax.nn.softmax(nh * sharpen_head, axis=1)
    nh = nh / jnp.maximum(nh.sum(axis=1, keepdims=True), 1e-8)
    nt = jax.nn.softmax(nt * sharpen_tail, axis=1)
    nt = nt / jnp.maximum(nt.sum(axis=1, keepdims=True), 1e-8)

    gv = jnp.einsum('bv,b->bv', get_val, should_get)
    return gv, nq, nh, nt


if __name__ == "__main__":
    B, N, V = 2, 8, 32          # batch, queue_size, vec_size
    zero_offset = 1e-3

    # Queue.init() semantics (deterministic state init)
    head = jnp.zeros((B, N), jnp.float32).at[:, 1].set(1.0)
    tail = jnp.zeros((B, N), jnp.float32).at[:, 0].set(1.0)
    queue = jnp.zeros((B, N, V), jnp.float32) + zero_offset
    zero_vec = jnp.zeros((B, V), jnp.float32) + zero_offset

    key = jax.random.PRNGKey(0)
    k1, k2, k3, k4 = jax.random.split(key, 4)
    should_put = jax.nn.sigmoid(jax.random.normal(k1, (B,), jnp.float32))
    should_get = jax.nn.sigmoid(jax.random.normal(k2, (B,), jnp.float32))
    should_null = jax.nn.sigmoid(jax.random.normal(k3, (B,), jnp.float32))
    value = jax.random.normal(k4, (B, V), jnp.float32)
    sharpen_head = jnp.float32(5.0)
    sharpen_tail = jnp.float32(5.0)

    outs = queue_forward(sharpen_head, sharpen_tail, should_put, should_get,
                         should_null, value, queue, head, tail, zero_vec)
    outs = jax.block_until_ready(outs)

    refs = queue_forward_ref(sharpen_head, sharpen_tail, should_put, should_get,
                             should_null, value, queue, head, tail, zero_vec)
    for o, r in zip(outs, refs):
        np.testing.assert_allclose(np.asarray(o), np.asarray(r), rtol=1e-5, atol=1e-5)

    print("KERNEL_OK")
</pallas_src>

<mosaic_0001>
module attributes {stable_mosaic.version = 11 : i64} {
  func.func @queue_kernel(%arg0: i32, %arg1: memref<2x256xf32, #tpu.memory_space<vmem>>, %arg2: memref<2x128xf32, #tpu.memory_space<vmem>>, %arg3: memref<8x256xf32, #tpu.memory_space<vmem>>, %arg4: memref<32x256xf32, #tpu.memory_space<vmem>>, %arg5: memref<256x32xf32, #tpu.memory_space<vmem>>, %arg6: memref<2x256xf32, #tpu.memory_space<vmem>>, %arg7: memref<2x128xf32, #tpu.memory_space<vmem>>) attributes {dimension_semantics = [#tpu.dimension_semantics<parallel>], iteration_bounds = array<i64: 1>, scalar_prefetch = 0 : i64, scratch_operands = 0 : i64, tpu.core_type = #tpu.core_type<tc>, window_params = [{transform_indices = @transform_0, window_bounds = array<i64: 2, 256>}, {transform_indices = @transform_1, window_bounds = array<i64: 2, 128>}, {pipeline_mode = #tpu.pipeline_mode<synchronous>, transform_indices = @transform_2, window_bounds = array<i64: 8, 256>}, {pipeline_mode = #tpu.pipeline_mode<synchronous>, transform_indices = @transform_3, window_bounds = array<i64: 32, 256>}, {pipeline_mode = #tpu.pipeline_mode<synchronous>, transform_indices = @transform_4, window_bounds = array<i64: 256, 32>}, {transform_indices = @transform_5, window_bounds = array<i64: 2, 256>}, {transform_indices = @transform_6, window_bounds = array<i64: 2, 128>}]} {
    %c0 = arith.constant 0 : index
    %c0_0 = arith.constant 0 : index
    %0 = vector.load %arg1[%c0, %c0_0] : memref<2x256xf32, #tpu.memory_space<vmem>>, vector<2x256xf32>
    %c0_1 = arith.constant 0 : index
    %c0_2 = arith.constant 0 : index
    %1 = vector.load %arg2[%c0_1, %c0_2] : memref<2x128xf32, #tpu.memory_space<vmem>>, vector<2x128xf32>
    %c0_3 = arith.constant 0 : index
    %c0_4 = arith.constant 0 : index
    %2 = vector.load %arg3[%c0_3, %c0_4] : memref<8x256xf32, #tpu.memory_space<vmem>>, vector<8x256xf32>
    %c0_5 = arith.constant 0 : index
    %c0_6 = arith.constant 0 : index
    %3 = vector.load %arg4[%c0_5, %c0_6] : memref<32x256xf32, #tpu.memory_space<vmem>>, vector<32x256xf32>
    %c0_7 = arith.constant 0 : index
    %c0_8 = arith.constant 0 : index
    %4 = vector.load %arg5[%c0_7, %c0_8] : memref<256x32xf32, #tpu.memory_space<vmem>>, vector<256x32xf32>
    %5 = vector.extract_strided_slice %1 {offsets = [0, 0], sizes = [2, 8], strides = [1, 1]} : vector<2x128xf32> to vector<2x8xf32>
    %cst = arith.constant dense<0.000000e+00> : vector<2x256xf32>
    %6 = tpu.matmul %5, %2, %cst {dimension_numbers = #tpu.dot_dimension_numbers<[1], [0], [0], [1], [0, 0, 1, 1], [], []>} : vector<2x8xf32>, vector<8x256xf32>, vector<2x256xf32> -> vector<2x256xf32>
    %7 = vector.extract_strided_slice %1 {offsets = [0, 8], sizes = [2, 8], strides = [1, 1]} : vector<2x128xf32> to vector<2x8xf32>
    %cst_9 = arith.constant dense<0.000000e+00> : vector<2x256xf32>
    %8 = tpu.matmul %7, %2, %cst_9 {dimension_numbers = #tpu.dot_dimension_numbers<[1], [0], [0], [1], [0, 0, 1, 1], [], []>} : vector<2x8xf32>, vector<8x256xf32>, vector<2x256xf32> -> vector<2x256xf32>
    %9 = vector.extract_strided_slice %1 {offsets = [0, 16], sizes = [2, 8], strides = [1, 1]} : vector<2x128xf32> to vector<2x8xf32>
    %cst_10 = arith.constant dense<0.000000e+00> : vector<2x256xf32>
    %10 = tpu.matmul %9, %2, %cst_10 {dimension_numbers = #tpu.dot_dimension_numbers<[1], [0], [0], [1], [0, 0, 1, 1], [], []>} : vector<2x8xf32>, vector<8x256xf32>, vector<2x256xf32> -> vector<2x256xf32>
    %11 = vector.extract_strided_slice %1 {offsets = [0, 24], sizes = [2, 32], strides = [1, 1]} : vector<2x128xf32> to vector<2x32xf32>
    %cst_11 = arith.constant dense<0.000000e+00> : vector<2x256xf32>
    %12 = tpu.matmul %11, %3, %cst_11 {dimension_numbers = #tpu.dot_dimension_numbers<[1], [0], [0], [1], [0, 0, 1, 1], [], []>} : vector<2x32xf32>, vector<32x256xf32>, vector<2x256xf32> -> vector<2x256xf32>
    %13 = vector.extract_strided_slice %1 {offsets = [0, 56], sizes = [2, 32], strides = [1, 1]} : vector<2x128xf32> to vector<2x32xf32>
    %cst_12 = arith.constant dense<0.000000e+00> : vector<2x256xf32>
    %14 = tpu.matmul %13, %3, %cst_12 {dimension_numbers = #tpu.dot_dimension_numbers<[1], [0], [0], [1], [0, 0, 1, 1], [], []>} : vector<2x32xf32>, vector<32x256xf32>, vector<2x256xf32> -> vector<2x256xf32>
    %15 = arith.mulf %0, %6 : vector<2x256xf32>
    %16 = arith.mulf %12, %8 : vector<2x256xf32>
    %17 = arith.addf %15, %16 : vector<2x256xf32>
    %18 = arith.mulf %14, %10 : vector<2x256xf32>
    %19 = arith.addf %17, %18 : vector<2x256xf32>
    %c0_13 = arith.constant 0 : index
    %c0_14 = arith.constant 0 : index
    %20 = vector.load %arg6[%c0_13, %c0_14] : memref<2x256xf32, #tpu.memory_space<vmem>>, vector<2x256xf32>
    tpu.vector_store %arg6[%c0_13, %c0_14], %19 {strides = array<i32>} : memref<2x256xf32, #tpu.memory_space<vmem>>, vector<2x256xf32>,
    %21 = arith.mulf %0, %10 : vector<2x256xf32>
    %cst_15 = arith.constant dense<0.000000e+00> : vector<2x32xf32>
    %22 = tpu.matmul %21, %4, %cst_15 {dimension_numbers = #tpu.dot_dimension_numbers<[1], [0], [0], [1], [0, 0, 1, 1], [], []>} : vector<2x256xf32>, vector<256x32xf32>, vector<2x32xf32> -> vector<2x32xf32>
    %23 = vector.extract_strided_slice %1 {offsets = [0, 88], sizes = [2, 8], strides = [1, 1]} : vector<2x128xf32> to vector<2x8xf32>
    %cst_16 = arith.constant dense<0xFF800000> : vector<2xf32>
    %24 = vector.multi_reduction <maximumf>, %23, %cst_16 [1] : vector<2x8xf32> to vector<2xf32>
    %25 = vector.shape_cast %24 : vector<2xf32> to vector<2x1xf32>
    %26 = vector.broadcast %25 : vector<2x1xf32> to vector<2x8xf32>
    %27 = arith.subf %23, %26 : vector<2x8xf32>
    %28 = math.exp %27 : vector<2x8xf32>
    %cst_17 = arith.constant dense<0.000000e+00> : vector<2xf32>
    %29 = vector.multi_reduction <add>, %28, %cst_17 [1] : vector<2x8xf32> to vector<2xf32>
    %30 = vector.shape_cast %29 : vector<2xf32> to vector<2x1xf32>
    %31 = tpu.reciprocal %30 : vector<2x1xf32> -> vector<2x1xf32>
    %32 = vector.broadcast %31 : vector<2x1xf32> to vector<2x8xf32>
    %33 = arith.mulf %28, %32 : vector<2x8xf32>
    %cst_18 = arith.constant dense<0.000000e+00> : vector<2xf32>
    %34 = vector.multi_reduction <add>, %33, %cst_18 [1] : vector<2x8xf32> to vector<2xf32>
    %35 = vector.shape_cast %34 : vector<2xf32> to vector<2x1xf32>
    %cst_19 = arith.constant 9.99999993E-9 : f32
    %36 = vector.broadcast %cst_19 : f32 to vector<2x1xf32>
    %37 = arith.maximumf %35, %36 : vector<2x1xf32>
    %38 = tpu.reciprocal %37 : vector<2x1xf32> -> vector<2x1xf32>
    %39 = vector.broadcast %38 : vector<2x1xf32> to vector<2x8xf32>
    %40 = arith.mulf %33, %39 : vector<2x8xf32>
    %41 = vector.extract_strided_slice %1 {offsets = [0, 96], sizes = [2, 8], strides = [1, 1]} : vector<2x128xf32> to vector<2x8xf32>
    %cst_20 = arith.constant dense<0xFF800000> : vector<2xf32>
    %42 = vector.multi_reduction <maximumf>, %41, %cst_20 [1] : vector<2x8xf32> to vector<2xf32>
    %43 = vector.shape_cast %42 : vector<2xf32> to vector<2x1xf32>
    %44 = vector.broadcast %43 : vector<2x1xf32> to vector<2x8xf32>
    %45 = arith.subf %41, %44 : vector<2x8xf32>
    %46 = math.exp %45 : vector<2x8xf32>
    %cst_21 = arith.constant dense<0.000000e+00> : vector<2xf32>
    %47 = vector.multi_reduction <add>, %46, %cst_21 [1] : vector<2x8xf32> to vector<2xf32>
    %48 = vector.shape_cast %47 : vector<2xf32> to vector<2x1xf32>
    %49 = tpu.reciprocal %48 : vector<2x1xf32> -> vector<2x1xf32>
    %50 = vector.broadcast %49 : vector<2x1xf32> to vector<2x8xf32>
    %51 = arith.mulf %46, %50 : vector<2x8xf32>
    %cst_22 = arith.constant dense<0.000000e+00> : vector<2xf32>
    %52 = vector.multi_reduction <add>, %51, %cst_22 [1] : vector<2x8xf32> to vector<2xf32>
    %53 = vector.shape_cast %52 : vector<2xf32> to vector<2x1xf32>
    %cst_23 = arith.constant 9.99999993E-9 : f32
    %54 = vector.broadcast %cst_23 : f32 to vector<2x1xf32>
    %55 = arith.maximumf %53, %54 : vector<2x1xf32>
    %56 = tpu.reciprocal %55 : vector<2x1xf32> -> vector<2x1xf32>
    %57 = vector.broadcast %56 : vector<2x1xf32> to vector<2x8xf32>
    %58 = arith.mulf %51, %57 : vector<2x8xf32>
    %cst_24 = arith.constant 0.000000e+00 : f32
    %59 = vector.broadcast %cst_24 : f32 to vector<2x128xf32>
    %c0_25 = arith.constant 0 : index
    %c0_26 = arith.constant 0 : index
    %60 = vector.load %arg7[%c0_25, %c0_26] : memref<2x128xf32, #tpu.memory_space<vmem>>, vector<2x128xf32>
    tpu.vector_store %arg7[%c0_25, %c0_26], %59 {strides = array<i32>} : memref<2x128xf32, #tpu.memory_space<vmem>>, vector<2x128xf32>,
    %c0_27 = arith.constant 0 : index
    %c0_28 = arith.constant 0 : index
    %61 = vector.load %arg7[%c0_27, %c0_28] : memref<2x128xf32, #tpu.memory_space<vmem>>, vector<2x32xf32>
    tpu.vector_store %arg7[%c0_27, %c0_28], %22 {strides = array<i32>} : memref<2x128xf32, #tpu.memory_space<vmem>>, vector<2x32xf32>,
    %c0_29 = arith.constant 0 : index
    %c32 = arith.constant 32 : index
    %62 = vector.load %arg7[%c0_29, %c32] : memref<2x128xf32, #tpu.memory_space<vmem>>, vector<2x8xf32>
    tpu.vector_store %arg7[%c0_29, %c32], %40 {strides = array<i32>} : memref<2x128xf32, #tpu.memory_space<vmem>>, vector<2x8xf32>,
    %c0_30 = arith.constant 0 : index
    %c40 = arith.constant 40 : index
    %63 = vector.load %arg7[%c0_30, %c40] : memref<2x128xf32, #tpu.memory_space<vmem>>, vector<2x8xf32>
    tpu.vector_store %arg7[%c0_30, %c40], %58 {strides = array<i32>} : memref<2x128xf32, #tpu.memory_space<vmem>>, vector<2x8xf32>,
    return
  }
  func.func @transform_0(%arg0: i32) -> (i32, i32) {
    %c0_i32 = arith.constant 0 : i32
    %c0_i32_0 = arith.constant 0 : i32
    return %arg0, %c0_i32 : i32, i32
  }
  func.func @transform_1(%arg0: i32) -> (i32, i32) {
    %c0_i32 = arith.constant 0 : i32
    %c0_i32_0 = arith.constant 0 : i32
    return %arg0, %c0_i32 : i32, i32
  }
  func.func @transform_2(%arg0: i32) -> (i32, i32) {
    %c0_i32 = arith.constant 0 : i32
    %c0_i32_0 = arith.constant 0 : i32
    %c0_i32_1 = arith.constant 0 : i32
    return %c0_i32, %c0_i32_0 : i32, i32
  }
  func.func @transform_3(%arg0: i32) -> (i32, i32) {
    %c0_i32 = arith.constant 0 : i32
    %c0_i32_0 = arith.constant 0 : i32
    %c0_i32_1 = arith.constant 0 : i32
    return %c0_i32, %c0_i32_0 : i32, i32
  }
  func.func @transform_4(%arg0: i32) -> (i32, i32) {
    %c0_i32 = arith.constant 0 : i32
    %c0_i32_0 = arith.constant 0 : i32
    %c0_i32_1 = arith.constant 0 : i32
    return %c0_i32, %c0_i32_0 : i32, i32
  }
  func.func @transform_5(%arg0: i32) -> (i32, i32) {
    %c0_i32 = arith.constant 0 : i32
    %c0_i32_0 = arith.constant 0 : i32
    return %arg0, %c0_i32 : i32, i32
  }
  func.func @transform_6(%arg0: i32) -> (i32, i32) {
    %c0_i32 = arith.constant 0 : i32
    %c0_i32_0 = arith.constant 0 : i32
    return %arg0, %c0_i32 : i32, i32
  }
}

</mosaic_0001>

<llo_original>
// kernel: queue_forward.1
$region0: #{queue_forward.1}
  #allocation0 [shape = 'u32[]', space=smem, size = 0x4, offset = 0x4, fixed_abs, tag = 'smem constant byte address 0x4 - core index']
  #allocation1 [shape = 'u32[144,128]{1,0:T(1,128)}', space=vmem, size = 0x12000, scoped, tag = 'internal scratch']
  %s0 = inlined_call_operand.vmem [shape: f32[2,256], index: 0, kind: input, shape index: {}]
  %s1 = inlined_call_operand.vmem [shape: f32[2,128], index: 1, kind: input, shape index: {}]
  %s2 = inlined_call_operand.vmem [shape: f32[8,256], index: 2, kind: input, shape index: {}]
  %s3 = inlined_call_operand.vmem [shape: f32[32,256], index: 3, kind: input, shape index: {}]
  %s4 = inlined_call_operand.hbm [shape: f32[256,32], index: 4, kind: input, shape index: {}]
  %s5 = inlined_call_operand.vmem [shape: f32[2,256], index: 5, kind: output, shape index: {0}]
  %s6 = inlined_call_operand.vmem [shape: f32[2,128], index: 6, kind: output, shape index: {1}]
  %7 = xla_tuple %s5, %s6
  %s8 = sld [smem:[#allocation0]]
  $region42: #{queue_forward.1} parent=0
    _
  %s10 = ssub.s32 1, %s8
  %s11 = scalar_select 0, %s10, %s8
  $region1: #{queue_forward.1} parent=0
    #allocation2 [shape = 'u8[131072]{0}', space=vmem, size = 0x20000, scoped, tag = 'input window, operand 4, single buffered']
    #allocation3 [shape = 's32[1]{0}', space=sflag, size = 0x4, scoped, tag = 'scoped memory for queue_forward.1']
    %12 = vsyncpa [#allocation3], 0
    // Predicated region
    $region2: #{queue_forward.1} parent=1 // pred_check
      _
    $region3: #{queue_forward.1} parent=1 // pred_check_branch
      %14 = sbr.rel (0) target = $region5
    $region4: #{queue_forward.1} parent=1 // pred_region
      _
    $region5: #{queue_forward.1} parent=1 // pred_fallthru
      _
    // Predicated region
    $region6: #{queue_forward.1} parent=1 // pred_check
      _
    $region7: #{queue_forward.1} parent=1 // pred_check_branch
      %16 = sbr.rel (0) target = $region9
    $region8: #{queue_forward.1} parent=1 // pred_region
      _
    $region9: #{queue_forward.1} parent=1 // pred_fallthru
      _
    // Predicated region
    $region10: #{queue_forward.1} parent=1 // pred_check
      _
    $region11: #{queue_forward.1} parent=1 // pred_check_branch
      %18 = sbr.rel (0) target = $region13
    $region12: #{queue_forward.1} parent=1 // pred_region
      _
    $region13: #{queue_forward.1} parent=1 // pred_fallthru
      _
    // Predicated region
    $region14: #{queue_forward.1} parent=1 // pred_check
      _
    $region15: #{queue_forward.1} parent=1 // pred_check_branch
      %20 = sbr.rel (0) target = $region17
    $region16: #{queue_forward.1} parent=1 // pred_region
      _
    $region17: #{queue_forward.1} parent=1 // pred_fallthru
      _
    // Predicated region
    $region18: #{queue_forward.1} parent=1 // pred_check
      _
    $region19: #{queue_forward.1} parent=1 // pred_check_branch
      %22 = sbr.rel (0) target = $region21
    $region20: #{queue_forward.1} parent=1 // pred_region
      %s24 = ssub.s32 4096, 4096
      %25 = vsyncadd [#allocation3], %s24
      %s26 = sshll.u32 [#allocation2], 4
      %s27 = int_to_ptr.vmem [resolvable:$true] %s26
      %32 = dma.hbm_to_vmem [thread:$0]  %s4, 4096, %s27, [#allocation3], 128, 128, 8
    $region21: #{queue_forward.1} parent=1 // pred_fallthru
      _
    // Predicated region
    $region22: #{queue_forward.1} parent=1 // pred_check
      _
    $region23: #{queue_forward.1} parent=1 // pred_check_branch
      %34 = sbr.rel (0) target = $region25
    $region24: #{queue_forward.1} parent=1 // pred_region
      %35 = dma.done [#allocation3], 4096
    $region25: #{queue_forward.1} parent=1 // pred_fallthru
      _
    %v36 = vld [vmem:[%s0] sm:$0xf]
    %v37 = vld [vmem:[%s1] sm:$0x3]
    %v38 = vld [vmem:[%s2] sm:$0xff]
    %v39 = vld [vmem:[%s2 + $0x8] sm:$0xff]
    %v40 = vld [vmem:[%s3] sm:$0xff]
    %v41 = vld [vmem:[%s3 + $0x8] sm:$0xff]
    %v42 = vld [vmem:[%s3 + $0x10] sm:$0xff]
    %v43 = vld [vmem:[%s3 + $0x18] sm:$0xff]
    %v44 = vld [vmem:[%s3 + $0x20] sm:$0xff]
    %v45 = vld [vmem:[%s3 + $0x28] sm:$0xff]
    %v46 = vld [vmem:[%s3 + $0x30] sm:$0xff]
    %v47 = vld [vmem:[%s3 + $0x38] sm:$0xff]
    %v48 = vld [vmem:[#allocation2] sm:$0xff]
    %v49 = vld [vmem:[#allocation2 + $0x8] sm:$0xff]
    %v50 = vld [vmem:[#allocation2 + $0x10] sm:$0xff]
    %v51 = vld [vmem:[#allocation2 + $0x18] sm:$0xff]
    %v52 = vld [vmem:[#allocation2 + $0x20] sm:$0xff]
    %v53 = vld [vmem:[#allocation2 + $0x28] sm:$0xff]
    %v54 = vld [vmem:[#allocation2 + $0x30] sm:$0xff]
    %v55 = vld [vmem:[#allocation2 + $0x38] sm:$0xff]
    %v56 = vld [vmem:[#allocation2 + $0x40] sm:$0xff]
    %v57 = vld [vmem:[#allocation2 + $0x48] sm:$0xff]
    %v58 = vld [vmem:[#allocation2 + $0x50] sm:$0xff]
    %v59 = vld [vmem:[#allocation2 + $0x58] sm:$0xff]
    %v60 = vld [vmem:[#allocation2 + $0x60] sm:$0xff]
    %v61 = vld [vmem:[#allocation2 + $0x68] sm:$0xff]
    %v62 = vld [vmem:[#allocation2 + $0x70] sm:$0xff]
    %v63 = vld [vmem:[#allocation2 + $0x78] sm:$0xff]
    %v64 = vld [vmem:[#allocation2 + $0x80] sm:$0xff]
    %v65 = vld [vmem:[#allocation2 + $0x88] sm:$0xff]
    %v66 = vld [vmem:[#allocation2 + $0x90] sm:$0xff]
    %v67 = vld [vmem:[#allocation2 + $0x98] sm:$0xff]
    %v68 = vld [vmem:[#allocation2 + $0xa0] sm:$0xff]
    %v69 = vld [vmem:[#allocation2 + $0xa8] sm:$0xff]
    %v70 = vld [vmem:[#allocation2 + $0xb0] sm:$0xff]
    %v71 = vld [vmem:[#allocation2 + $0xb8] sm:$0xff]
    %v72 = vld [vmem:[#allocation2 + $0xc0] sm:$0xff]
    %v73 = vld [vmem:[#allocation2 + $0xc8] sm:$0xff]
    %v74 = vld [vmem:[#allocation2 + $0xd0] sm:$0xff]
    %v75 = vld [vmem:[#allocation2 + $0xd8] sm:$0xff]
    %v76 = vld [vmem:[#allocation2 + $0xe0] sm:$0xff]
    %v77 = vld [vmem:[#allocation2 + $0xe8] sm:$0xff]
    %v78 = vld [vmem:[#allocation2 + $0xf0] sm:$0xff]
    %v79 = vld [vmem:[#allocation2 + $0xf8] sm:$0xff]
    %vm80 = vcmask 64512
    %v82 = vsel %vm80, %v37, 0
    %84 = vmatprep.subr.mxu0 %v39
    %85 = vmatpush1.msra.mxu0 %v38
    %86 = vmatprep.subr.mxu0 0.0
    %87 = vmatpush1.msra.mxu0 0.0
    %88 = vmatprep.subr.mxu0 0.0
    %89 = vmatpush1.msra.mxu0 0.0
    %90 = vmatprep.subr.mxu0 0.0
    %91 = vmatpush1.msra.mxu0 0.0
    %92 = vmatprep.subr.mxu0 0.0
    %93 = vmatpush1.msra.mxu0 0.0
    %94 = vmatprep.subr.mxu0 0.0
    %95 = vmatpush1.msra.mxu0 0.0
    %96 = vmatprep.subr.mxu0 0.0
    %97 = vmatpush1.msra.mxu0 0.0
    %98 = vmatprep.subr.mxu0 0.0
    %99 = vmatpush1.msra.mxu0 0.0
    %100 = vmatprep.subr.mxu0 0.0
    %101 = vmatpush1.msra.mxu0 0.0
    %102 = vmatprep.subr.mxu0 0.0
    %103 = vmatpush1.msra.mxu0 0.0
    %104 = vmatprep.subr.mxu0 0.0
    %105 = vmatpush1.msra.mxu0 0.0
    %106 = vmatprep.subr.mxu0 0.0
    %107 = vmatpush1.msra.mxu0 0.0
    %108 = vmatprep.subr.mxu0 0.0
    %109 = vmatpush1.msra.mxu0 0.0
    %110 = vmatprep.subr.mxu0 0.0
    %111 = vmatpush1.msra.mxu0 0.0
    %112 = vmatprep.subr.mxu0 0.0
    %113 = vmatpush1.msra.mxu0 0.0
    %114 = vmatprep.subr.mxu0 0.0
    %115 = vmatpush1.msra.mxu0 0.0
    %116 = vmatprep.subr.mxu0 0.0
    %117 = vmatpush1.msra.mxu0 0.0
    %118 = vmatprep.subr.mxu0 0.0
    %119 = vmatpush1.msra.mxu0 0.0
    %120 = vmatprep.subr.mxu0 0.0
    %121 = vmatpush1.msra.mxu0 0.0
    %122 = vmatprep.subr.mxu0 0.0
    %123 = vmatpush1.msra.mxu0 0.0
    %124 = vmatprep.subr.mxu0 0.0
    %125 = vmatpush1.msra.mxu0 0.0
    %126 = vmatprep.subr.mxu0 0.0
    %127 = vmatpush1.msra.mxu0 0.0
    %128 = vmatprep.subr.mxu0 0.0
    %129 = vmatpush1.msra.mxu0 0.0
    %130 = vmatprep.subr.mxu0 0.0
    %131 = vmatpush1.msra.mxu0 0.0
    %132 = vmatprep.subr.mxu0 0.0
    %133 = vmatpush1.msra.mxu0 0.0
    %134 = vmatprep.subr.mxu0 0.0
    %135 = vmatpush1.msra.mxu0 0.0
    %136 = vmatprep.subr.mxu0 0.0
    %137 = vmatpush1.msra.mxu0 0.0
    %138 = vmatprep.subr.mxu0 0.0
    %139 = vmatpush1.msra.mxu0 0.0
    %140 = vmatprep.subr.mxu0 0.0
    %141 = vmatpush1.msra.mxu0 0.0
    %142 = vmatprep.subr.mxu0 0.0
    %143 = vmatpush1.msra.mxu0 0.0
    %144 = vmatprep.subr.mxu0 0.0
    %145 = vmatpush1.msra.mxu0 0.0
    %146 = vmatprep.subr.mxu0 0.0
    %147 = vmatpush1.msra.mxu0 0.0
    %148 = vmatprep.mubr.f32.mxu0 0.0
    %149 = vmatmul.mubr.f32.gmra.mrb[0].mxu0 %v82
    %v150 = vpop.f32.mrb[0].mxu0
    %v151 = vadd.f32 0.0, %v150
    %v152 = vpop.f32.mrb[0].mxu0
    %v153 = vadd.f32 0.0, %v152
    %154 = vdwg.mxu0
    %155 = vrot.lane.b32.xlu0 %v37, 120
    %v156 = vpop.permute.xlu0 %155
    %v157 = vsel %vm80, %v156, 0
    %159 = vmatprep.subr.mxu0 %v39
    %160 = vmatpush1.msra.mxu0 %v38
    %161 = vmatprep.subr.mxu0 0.0
    %162 = vmatpush1.msra.mxu0 0.0
    %163 = vmatprep.subr.mxu0 0.0
    %164 = vmatpush1.msra.mxu0 0.0
    %165 = vmatprep.subr.mxu0 0.0
    %166 = vmatpush1.msra.mxu0 0.0
    %167 = vmatprep.subr.mxu0 0.0
    %168 = vmatpush1.msra.mxu0 0.0
    %169 = vmatprep.subr.mxu0 0.0
    %170 = vmatpush1.msra.mxu0 0.0
    %171 = vmatprep.subr.mxu0 0.0
    %172 = vmatpush1.msra.mxu0 0.0
    %173 = vmatprep.subr.mxu0 0.0
    %174 = vmatpush1.msra.mxu0 0.0
    %175 = vmatprep.subr.mxu0 0.0
    %176 = vmatpush1.msra.mxu0 0.0
    %177 = vmatprep.subr.mxu0 0.0
    %178 = vmatpush1.msra.mxu0 0.0
    %179 = vmatprep.subr.mxu0 0.0
    %180 = vmatpush1.msra.mxu0 0.0
    %181 = vmatprep.subr.mxu0 0.0
    %182 = vmatpush1.msra.mxu0 0.0
    %183 = vmatprep.subr.mxu0 0.0
    %184 = vmatpush1.msra.mxu0 0.0
    %185 = vmatprep.subr.mxu0 0.0
    %186 = vmatpush1.msra.mxu0 0.0
    %187 = vmatprep.subr.mxu0 0.0
    %188 = vmatpush1.msra.mxu0 0.0
    %189 = vmatprep.subr.mxu0 0.0
    %190 = vmatpush1.msra.mxu0 0.0
    %191 = vmatprep.subr.mxu0 0.0
    %192 = vmatpush1.msra.mxu0 0.0
    %193 = vmatprep.subr.mxu0 0.0
    %194 = vmatpush1.msra.mxu0 0.0
    %195 = vmatprep.subr.mxu0 0.0
    %196 = vmatpush1.msra.mxu0 0.0
    %197 = vmatprep.subr.mxu0 0.0
    %198 = vmatpush1.msra.mxu0 0.0
    %199 = vmatprep.subr.mxu0 0.0
    %200 = vmatpush1.msra.mxu0 0.0
    %201 = vmatprep.subr.mxu0 0.0
    %202 = vmatpush1.msra.mxu0 0.0
    %203 = vmatprep.subr.mxu0 0.0
    %204 = vmatpush1.msra.mxu0 0.0
    %205 = vmatprep.subr.mxu0 0.0
    %206 = vmatpush1.msra.mxu0 0.0
    %207 = vmatprep.subr.mxu0 0.0
    %208 = vmatpush1.msra.mxu0 0.0
    %209 = vmatprep.subr.mxu0 0.0
    %210 = vmatpush1.msra.mxu0 0.0
    %211 = vmatprep.subr.mxu0 0.0
    %212 = vmatpush1.msra.mxu0 0.0
    %213 = vmatprep.subr.mxu0 0.0
    %214 = vmatpush1.msra.mxu0 0.0
    %215 = vmatprep.subr.mxu0 0.0
    %216 = vmatpush1.msra.mxu0 0.0
    %217 = vmatprep.subr.mxu0 0.0
    %218 = vmatpush1.msra.mxu0 0.0
    %219 = vmatprep.subr.mxu0 0.0
    %220 = vmatpush1.msra.mxu0 0.0
    %221 = vmatprep.subr.mxu0 0.0
    %222 = vmatpush1.msra.mxu0 0.0
    %223 = vmatprep.mubr.f32.mxu0 0.0
    %224 = vmatmul.mubr.f32.gmra.mrb[0].mxu0 %v157
    %v225 = vpop.f32.mrb[0].mxu0
    %v226 = vadd.f32 0.0, %v225
    %v227 = vpop.f32.mrb[0].mxu0
    %v228 = vadd.f32 0.0, %v227
    %229 = vdwg.mxu0
    %230 = vrot.lane.b32.xlu0 %v37, 112
    %v231 = vpop.permute.xlu0 %230
    %v232 = vsel %vm80, %v231, 0
    %234 = vmatprep.subr.mxu0 %v39
    %235 = vmatpush1.msra.mxu0 %v38
    %236 = vmatprep.subr.mxu0 0.0
    %237 = vmatpush1.msra.mxu0 0.0
    %238 = vmatprep.subr.mxu0 0.0
    %239 = vmatpush1.msra.mxu0 0.0
    %240 = vmatprep.subr.mxu0 0.0
    %241 = vmatpush1.msra.mxu0 0.0
    %242 = vmatprep.subr.mxu0 0.0
    %243 = vmatpush1.msra.mxu0 0.0
    %244 = vmatprep.subr.mxu0 0.0
    %245 = vmatpush1.msra.mxu0 0.0
    %246 = vmatprep.subr.mxu0 0.0
    %247 = vmatpush1.msra.mxu0 0.0
    %248 = vmatprep.subr.mxu0 0.0
    %249 = vmatpush1.msra.mxu0 0.0
    %250 = vmatprep.subr.mxu0 0.0
    %251 = vmatpush1.msra.mxu0 0.0
    %252 = vmatprep.subr.mxu0 0.0
    %253 = vmatpush1.msra.mxu0 0.0
    %254 = vmatprep.subr.mxu0 0.0
    %255 = vmatpush1.msra.mxu0 0.0
    %256 = vmatprep.subr.mxu0 0.0
    %257 = vmatpush1.msra.mxu0 0.0
    %258 = vmatprep.subr.mxu0 0.0
    %259 = vmatpush1.msra.mxu0 0.0
    %260 = vmatprep.subr.mxu0 0.0
    %261 = vmatpush1.msra.mxu0 0.0
    %262 = vmatprep.subr.mxu0 0.0
    %263 = vmatpush1.msra.mxu0 0.0
    %264 = vmatprep.subr.mxu0 0.0
    %265 = vmatpush1.msra.mxu0 0.0
    %266 = vmatprep.subr.mxu0 0.0
    %267 = vmatpush1.msra.mxu0 0.0
    %268 = vmatprep.subr.mxu0 0.0
    %269 = vmatpush1.msra.mxu0 0.0
    %270 = vmatprep.subr.mxu0 0.0
    %271 = vmatpush1.msra.mxu0 0.0
    %272 = vmatprep.subr.mxu0 0.0
    %273 = vmatpush1.msra.mxu0 0.0
    %274 = vmatprep.subr.mxu0 0.0
    %275 = vmatpush1.msra.mxu0 0.0
    %276 = vmatprep.subr.mxu0 0.0
    %277 = vmatpush1.msra.mxu0 0.0
    %278 = vmatprep.subr.mxu0 0.0
    %279 = vmatpush1.msra.mxu0 0.0
    %280 = vmatprep.subr.mxu0 0.0
    %281 = vmatpush1.msra.mxu0 0.0
    %282 = vmatprep.subr.mxu0 0.0
    %283 = vmatpush1.msra.mxu0 0.0
    %284 = vmatprep.subr.mxu0 0.0
    %285 = vmatpush1.msra.mxu0 0.0
    %286 = vmatprep.subr.mxu0 0.0
    %287 = vmatpush1.msra.mxu0 0.0
    %288 = vmatprep.subr.mxu0 0.0
    %289 = vmatpush1.msra.mxu0 0.0
    %290 = vmatprep.subr.mxu0 0.0
    %291 = vmatpush1.msra.mxu0 0.0
    %292 = vmatprep.subr.mxu0 0.0
    %293 = vmatpush1.msra.mxu0 0.0
    %294 = vmatprep.subr.mxu0 0.0
    %295 = vmatpush1.msra.mxu0 0.0
    %296 = vmatprep.subr.mxu0 0.0
    %297 = vmatpush1.msra.mxu0 0.0
    %298 = vmatprep.mubr.f32.mxu0 0.0
    %299 = vmatmul.mubr.f32.gmra.mrb[0].mxu0 %v232
    %v300 = vpop.f32.mrb[0].mxu0
    %v301 = vadd.f32 0.0, %v300
    %v302 = vpop.f32.mrb[0].mxu0
    %v303 = vadd.f32 0.0, %v302
    %304 = vdwg.mxu0
    %305 = vrot.lane.b32.xlu0 %v37, 104
    %v306 = vpop.permute.xlu0 %305
    %vm307 = vcmask 261120
    %v308 = vsel %vm307, %v306, 0
    %310 = vmatprep.subr.mxu0 %v41
    %311 = vmatpush1.msra.mxu0 %v40
    %312 = vmatprep.subr.mxu0 %v43
    %313 = vmatpush1.msra.mxu0 %v42
    %314 = vmatprep.subr.mxu0 %v45
    %315 = vmatpush1.msra.mxu0 %v44
    %316 = vmatprep.subr.mxu0 %v47
    %317 = vmatpush1.msra.mxu0 %v46
    %318 = vmatprep.subr.mxu0 0.0
    %319 = vmatpush1.msra.mxu0 0.0
    %320 = vmatprep.subr.mxu0 0.0
    %321 = vmatpush1.msra.mxu0 0.0
    %322 = vmatprep.subr.mxu0 0.0
    %323 = vmatpush1.msra.mxu0 0.0
    %324 = vmatprep.subr.mxu0 0.0
    %325 = vmatpush1.msra.mxu0 0.0
    %326 = vmatprep.subr.mxu0 0.0
    %327 = vmatpush1.msra.mxu0 0.0
    %328 = vmatprep.subr.mxu0 0.0
    %329 = vmatpush1.msra.mxu0 0.0
    %330 = vmatprep.subr.mxu0 0.0
    %331 = vmatpush1.msra.mxu0 0.0
    %332 = vmatprep.subr.mxu0 0.0
    %333 = vmatpush1.msra.mxu0 0.0
    %334 = vmatprep.subr.mxu0 0.0
    %335 = vmatpush1.msra.mxu0 0.0
    %336 = vmatprep.subr.mxu0 0.0
    %337 = vmatpush1.msra.mxu0 0.0
    %338 = vmatprep.subr.mxu0 0.0
    %339 = vmatpush1.msra.mxu0 0.0
    %340 = vmatprep.subr.mxu0 0.0
    %341 = vmatpush1.msra.mxu0 0.0
    %342 = vmatprep.subr.mxu0 0.0
    %343 = vmatpush1.msra.mxu0 0.0
    %344 = vmatprep.subr.mxu0 0.0
    %345 = vmatpush1.msra.mxu0 0.0
    %346 = vmatprep.subr.mxu0 0.0
    %347 = vmatpush1.msra.mxu0 0.0
    %348 = vmatprep.subr.mxu0 0.0
    %349 = vmatpush1.msra.mxu0 0.0
    %350 = vmatprep.subr.mxu0 0.0
    %351 = vmatpush1.msra.mxu0 0.0
    %352 = vmatprep.subr.mxu0 0.0
    %353 = vmatpush1.msra.mxu0 0.0
    %354 = vmatprep.subr.mxu0 0.0
    %355 = vmatpush1.msra.mxu0 0.0
    %356 = vmatprep.subr.mxu0 0.0
    %357 = vmatpush1.msra.mxu0 0.0
    %358 = vmatprep.subr.mxu0 0.0
    %359 = vmatpush1.msra.mxu0 0.0
    %360 = vmatprep.subr.mxu0 0.0
    %361 = vmatpush1.msra.mxu0 0.0
    %362 = vmatprep.subr.mxu0 0.0
    %363 = vmatpush1.msra.mxu0 0.0
    %364 = vmatprep.subr.mxu0 0.0
    %365 = vmatpush1.msra.mxu0 0.0
    %366 = vmatprep.subr.mxu0 0.0
    %367 = vmatpush1.msra.mxu0 0.0
    %368 = vmatprep.subr.mxu0 0.0
    %369 = vmatpush1.msra.mxu0 0.0
    %370 = vmatprep.subr.mxu0 0.0
    %371 = vmatpush1.msra.mxu0 0.0
    %372 = vmatprep.subr.mxu0 0.0
    %373 = vmatpush1.msra.mxu0 0.0
    %374 = vmatprep.mubr.f32.mxu0 0.0
    %375 = vmatmul.mubr.f32.gmra.mrb[0].mxu0 %v308
    %v376 = vpop.f32.mrb[0].mxu0
    %v377 = vadd.f32 0.0, %v376
    %v378 = vpop.f32.mrb[0].mxu0
    %v379 = vadd.f32 0.0, %v378
    %380 = vdwg.mxu0
    %381 = vrot.lane.b32.xlu0 %v37, 72
    %v382 = vpop.permute.xlu0 %381
    %v383 = vsel %vm307, %v382, 0
    %385 = vmatprep.subr.mxu0 %v41
    %386 = vmatpush1.msra.mxu0 %v40
    %387 = vmatprep.subr.mxu0 %v43
    %388 = vmatpush1.msra.mxu0 %v42
    %389 = vmatprep.subr.mxu0 %v45
    %390 = vmatpush1.msra.mxu0 %v44
    %391 = vmatprep.subr.mxu0 %v47
    %392 = vmatpush1.msra.mxu0 %v46
    %393 = vmatprep.subr.mxu0 0.0
    %394 = vmatpush1.msra.mxu0 0.0
    %395 = vmatprep.subr.mxu0 0.0
    %396 = vmatpush1.msra.mxu0 0.0
    %397 = vmatprep.subr.mxu0 0.0
    %398 = vmatpush1.msra.mxu0 0.0
    %399 = vmatprep.subr.mxu0 0.0
    %400 = vmatpush1.msra.mxu0 0.0
    %401 = vmatprep.subr.mxu0 0.0
    %402 = vmatpush1.msra.mxu0 0.0
    %403 = vmatprep.subr.mxu0 0.0
    %404 = vmatpush1.msra.mxu0 0.0
    %405 = vmatprep.subr.mxu0 0.0
    %406 = vmatpush1.msra.mxu0 0.0
    %407 = vmatprep.subr.mxu0 0.0
    %408 = vmatpush1.msra.mxu0 0.0
    %409 = vmatprep.subr.mxu0 0.0
    %410 = vmatpush1.msra.mxu0 0.0
    %411 = vmatprep.subr.mxu0 0.0
    %412 = vmatpush1.msra.mxu0 0.0
    %413 = vmatprep.subr.mxu0 0.0
    %414 = vmatpush1.msra.mxu0 0.0
    %415 = vmatprep.subr.mxu0 0.0
    %416 = vmatpush1.msra.mxu0 0.0
    %417 = vmatprep.subr.mxu0 0.0
    %418 = vmatpush1.msra.mxu0 0.0
    %419 = vmatprep.subr.mxu0 0.0
    %420 = vmatpush1.msra.mxu0 0.0
    %421 = vmatprep.subr.mxu0 0.0
    %422 = vmatpush1.msra.mxu0 0.0
    %423 = vmatprep.subr.mxu0 0.0
    %424 = vmatpush1.msra.mxu0 0.0
    %425 = vmatprep.subr.mxu0 0.0
    %426 = vmatpush1.msra.mxu0 0.0
    %427 = vmatprep.subr.mxu0 0.0
    %428 = vmatpush1.msra.mxu0 0.0
    %429 = vmatprep.subr.mxu0 0.0
    %430 = vmatpush1.msra.mxu0 0.0
    %431 = vmatprep.subr.mxu0 0.0
    %432 = vmatpush1.msra.mxu0 0.0
    %433 = vmatprep.subr.mxu0 0.0
    %434 = vmatpush1.msra.mxu0 0.0
    %435 = vmatprep.subr.mxu0 0.0
    %436 = vmatpush1.msra.mxu0 0.0
    %437 = vmatprep.subr.mxu0 0.0
    %438 = vmatpush1.msra.mxu0 0.0
    %439 = vmatprep.subr.mxu0 0.0
    %440 = vmatpush1.msra.mxu0 0.0
    %441 = vmatprep.subr.mxu0 0.0
    %442 = vmatpush1.msra.mxu0 0.0
    %443 = vmatprep.subr.mxu0 0.0
    %444 = vmatpush1.msra.mxu0 0.0
    %445 = vmatprep.subr.mxu0 0.0
    %446 = vmatpush1.msra.mxu0 0.0
    %447 = vmatprep.subr.mxu0 0.0
    %448 = vmatpush1.msra.mxu0 0.0
    %449 = vmatprep.mubr.f32.mxu0 0.0
    %450 = vmatmul.mubr.f32.gmra.mrb[0].mxu0 %v383
    %v451 = vpop.f32.mrb[0].mxu0
    %v452 = vadd.f32 0.0, %v451
    %v453 = vpop.f32.mrb[0].mxu0
    %v454 = vadd.f32 0.0, %v453
    %455 = vdwg.mxu0
    %v458 = vcombine.low %v151, %v153
    %v460 = vunpack.c.l.s4 1983009808
    %v461 = vunpack.c.0.s8 %v460
    %v462 = vlaneseq
    %v463 = vshrl.u32 %v462, 7
    %v464 = vsub.s32 %v461, %v463
    %v465 = vrot.slane %v458, %v464
    %v467 = vmul.f32 %v36, %v465
    %v468 = vmul.f32 %v377, %v226
    %v469 = vmul.f32 %v379, %v228
    %v472 = vcombine.low %v468, %v469
    %v474 = vunpack.c.l.s4 1983009808
    %v475 = vunpack.c.0.s8 %v474
    %v476 = vlaneseq
    %v477 = vshrl.u32 %v476, 7
    %v478 = vsub.s32 %v475, %v477
    %v479 = vrot.slane %v472, %v478
    %v481 = vadd.f32 %v467, %v479
    %v482 = vmul.f32 %v452, %v301
    %v483 = vmul.f32 %v454, %v303
    %v486 = vcombine.low %v482, %v483
    %v488 = vunpack.c.l.s4 1983009808
    %v489 = vunpack.c.0.s8 %v488
    %v490 = vlaneseq
    %v491 = vshrl.u32 %v490, 7
    %v492 = vsub.s32 %v489, %v491
    %v493 = vrot.slane %v486, %v492
    %v495 = vadd.f32 %v481, %v493
    %496 = vst [vmem:[%s5] sm:$0xf] %v495
    %v499 = vcombine.low %v301, %v303
    %v501 = vunpack.c.l.s4 1983009808
    %v502 = vunpack.c.0.s8 %v501
    %v503 = vlaneseq
    %v504 = vshrl.u32 %v503, 7
    %v505 = vsub.s32 %v502, %v504
    %v506 = vrot.slane %v499, %v505
    %v508 = vmul.f32 %v36, %v506
    %v511 = vunpack.c.l.s4 1983009808
    %v512 = vunpack.c.0.s8 %v511
    %v513 = vlaneseq
    %v514 = vshrl.u32 %v513, 7
    %v515 = vsub.s32 %v512, %v514
    %v516 = vrot.slane %v508, %v515
    %v517 = vcombine.high %v516, %v516
    %520 = vmatprep.subr.mxu0 0.0
    %521 = vmatpush1.msra.mxu0 %v48
    %522 = vmatprep.subr.mxu0 0.0
    %523 = vmatpush1.msra.mxu0 %v49
    %524 = vmatprep.subr.mxu0 0.0
    %525 = vmatpush1.msra.mxu0 %v50
    %526 = vmatprep.subr.mxu0 0.0
    %527 = vmatpush1.msra.mxu0 %v51
    %528 = vmatprep.subr.mxu0 0.0
    %529 = vmatpush1.msra.mxu0 %v52
    %530 = vmatprep.subr.mxu0 0.0
    %531 = vmatpush1.msra.mxu0 %v53
    %532 = vmatprep.subr.mxu0 0.0
    %533 = vmatpush1.msra.mxu0 %v54
    %534 = vmatprep.subr.mxu0 0.0
    %535 = vmatpush1.msra.mxu0 %v55
    %536 = vmatprep.subr.mxu0 0.0
    %537 = vmatpush1.msra.mxu0 %v56
    %538 = vmatprep.subr.mxu0 0.0
    %539 = vmatpush1.msra.mxu0 %v57
    %540 = vmatprep.subr.mxu0 0.0
    %541 = vmatpush1.msra.mxu0 %v58
    %542 = vmatprep.subr.mxu0 0.0
    %543 = vmatpush1.msra.mxu0 %v59
    %544 = vmatprep.subr.mxu0 0.0
    %545 = vmatpush1.msra.mxu0 %v60
    %546 = vmatprep.subr.mxu0 0.0
    %547 = vmatpush1.msra.mxu0 %v61
    %548 = vmatprep.subr.mxu0 0.0
    %549 = vmatpush1.msra.mxu0 %v62
    %550 = vmatprep.subr.mxu0 0.0
    %551 = vmatpush1.msra.mxu0 %v63
    %552 = vmatprep.subr.mxu0 0.0
    %553 = vmatpush1.msra.mxu0 %v64
    %554 = vmatprep.subr.mxu0 0.0
    %555 = vmatpush1.msra.mxu0 %v65
    %556 = vmatprep.subr.mxu0 0.0
    %557 = vmatpush1.msra.mxu0 %v66
    %558 = vmatprep.subr.mxu0 0.0
    %559 = vmatpush1.msra.mxu0 %v67
    %560 = vmatprep.subr.mxu0 0.0
    %561 = vmatpush1.msra.mxu0 %v68
    %562 = vmatprep.subr.mxu0 0.0
    %563 = vmatpush1.msra.mxu0 %v69
    %564 = vmatprep.subr.mxu0 0.0
    %565 = vmatpush1.msra.mxu0 %v70
    %566 = vmatprep.subr.mxu0 0.0
    %567 = vmatpush1.msra.mxu0 %v71
    %568 = vmatprep.subr.mxu0 0.0
    %569 = vmatpush1.msra.mxu0 %v72
    %570 = vmatprep.subr.mxu0 0.0
    %571 = vmatpush1.msra.mxu0 %v73
    %572 = vmatprep.subr.mxu0 0.0
    %573 = vmatpush1.msra.mxu0 %v74
    %574 = vmatprep.subr.mxu0 0.0
    %575 = vmatpush1.msra.mxu0 %v75
    %576 = vmatprep.subr.mxu0 0.0
    %577 = vmatpush1.msra.mxu0 %v76
    %578 = vmatprep.subr.mxu0 0.0
    %579 = vmatpush1.msra.mxu0 %v77
    %580 = vmatprep.subr.mxu0 0.0
    %581 = vmatpush1.msra.mxu0 %v78
    %582 = vmatprep.subr.mxu0 0.0
    %583 = vmatpush1.msra.mxu0 %v79
    %584 = vmatprep.mubr.f32.mxu0 %v517
    %585 = vmatmul.mubr.f32.gmra.mrb[0].mxu0 %v516
    %v586 = vpop.f32.mrb[0].mxu0
    %v587 = vadd.f32 0.0, %v586
    %v588 = vpop.f32.mrb[0].mxu0
    %589 = vdwg.mxu0
    %vm590 = vcmask 779968
    %v591 = vsel %vm590, %v37, -inf
    %592 = vmax.xlane.f32.xlu0 %v591
    %v593 = vpop.xlane.xlu0 %592
    %v594 = vsub.f32 %v37, %v593
    %v595 = vmul.f32 %v594, 1.442695
    %v596 = vpow.pop %v595
    %598 = vrot.lane.b32.xlu0 %v596, 40
    %v599 = vpop.permute.xlu0 %598
    %vm601 = vcmask 58368
    %v602 = vsel %vm601, %v599, 0.0
    %603 = vadd.xlane.f32.xlu0 %v602
    %v604 = vpop.xlane.xlu0 %603
    %v605 = vrcp.pop %v604
    %v606 = vmul.f32 %v596, %v605
    %608 = vrot.lane.b32.xlu0 %v606, 40
    %v609 = vpop.permute.xlu0 %608
    %v611 = vsel %vm601, %v609, 0.0
    %612 = vadd.xlane.f32.xlu0 %v611
    %v613 = vpop.xlane.xlu0 %612
    %v614 = vmax.f32 %v613, 1e-08
    %v615 = vrcp.pop %v614
    %v616 = vmul.f32 %v606, %v615
    %vm617 = vcmask 845568
    %v618 = vsel %vm617, %v37, -inf
    %619 = vmax.xlane.f32.xlu0 %v618
    %v620 = vpop.xlane.xlu0 %619
    %v621 = vsub.f32 %v37, %v620
    %v622 = vmul.f32 %v621, 1.442695
    %v623 = vpow.pop %v622
    %625 = vrot.lane.b32.xlu0 %v623, 32
    %v626 = vpop.permute.xlu0 %625
    %v628 = vsel %vm601, %v626, 0.0
    %629 = vadd.xlane.f32.xlu0 %v628
    %v630 = vpop.xlane.xlu0 %629
    %v631 = vrcp.pop %v630
    %v632 = vmul.f32 %v623, %v631
    %634 = vrot.lane.b32.xlu0 %v632, 32
    %v635 = vpop.permute.xlu0 %634
    %v637 = vsel %vm601, %v635, 0.0
    %638 = vadd.xlane.f32.xlu0 %v637
    %v639 = vpop.xlane.xlu0 %638
    %v640 = vmax.f32 %v639, 1e-08
    %v641 = vrcp.pop %v640
    %v642 = vmul.f32 %v632, %v641
    %643 = vst [vmem:[%s6] sm:$0x3] 0.0
    %vm644 = vcmask 254976
    %645 = vst.msk [vmem:[%s6] sm:$0x3] %vm644, %v587
    %647 = vrot.lane.b32.xlu0 %v616, 72
    %v648 = vpop.permute.xlu0 %647
    %vm650 = vcmask 320768
    %651 = vst.msk [vmem:[%s6] sm:$0x3] %vm650, %v648
    %653 = vrot.lane.b32.xlu0 %v642, 72
    %v654 = vpop.permute.xlu0 %653
    %vm656 = vcmask 386368
    %657 = vst.msk [vmem:[%s6] sm:$0x3] %vm656, %v654
    // Predicated region
    $region26: #{queue_forward.1} parent=1 // pred_check
      _
    $region27: #{queue_forward.1} parent=1 // pred_check_branch
      %659 = sbr.rel (0) target = $region29
    $region28: #{queue_forward.1} parent=1 // pred_region
      _
    $region29: #{queue_forward.1} parent=1 // pred_fallthru
      _
    // Predicated region
    $region30: #{queue_forward.1} parent=1 // pred_check
      _
    $region31: #{queue_forward.1} parent=1 // pred_check_branch
      %661 = sbr.rel (0) target = $region33
    $region32: #{queue_forward.1} parent=1 // pred_region
      _
    $region33: #{queue_forward.1} parent=1 // pred_fallthru
      _
    // Predicated region
    $region34: #{queue_forward.1} parent=1 // pred_check
      _
    $region35: #{queue_forward.1} parent=1 // pred_check_branch
      %663 = sbr.rel (0) target = $region37
    $region36: #{queue_forward.1} parent=1 // pred_region
      _
    $region37: #{queue_forward.1} parent=1 // pred_fallthru
      _
    // Predicated region
    $region38: #{queue_forward.1} parent=1 // pred_check
      _
    $region39: #{queue_forward.1} parent=1 // pred_check_branch
      %665 = sbr.rel (0) target = $region41
    $region40: #{queue_forward.1} parent=1 // pred_region
      _
    $region41: #{queue_forward.1} parent=1 // pred_fallthru
      _
    %666 = vsyncpa [#allocation3], 1

</llo_original>
